<compile_context>
chip_gen: v7x
topology: tpu7x:2x2x1
jax: 0.10.0
libtpu: 0.0.40
codegen_flags: <defaults>
</compile_context>

<pallas_src>
import functools
import math

import jax
import jax.numpy as jnp
from jax import lax
from jax.experimental import pallas as pl
from jax.experimental.pallas import tpu as pltpu


# --------------------------------------------------------------------------- #
# Kernels
# --------------------------------------------------------------------------- #
def _topk_kernel_f32(x_ref, o_ref, *, k: int):
    """Exact path for >=32-bit floats: 2 reduces/round, direct output accum."""
    work = x_ref[...].astype(jnp.float32)                  # (TM, D)
    tm, d = work.shape
    idx = lax.broadcasted_iota(jnp.int32, (tm, d), 1)      # lane index per row
    neg_inf = jnp.float32(-jnp.inf)

    def select_one(carry):
        work, out = carry
        m = jnp.max(work, axis=-1, keepdims=True)          # row max (XLU)
        is_max = work == m
        # lowest index among tied maxima (torch.topk / lax.top_k tie order)
        first = jnp.min(jnp.where(is_max, idx, d), axis=-1, keepdims=True)
        sel = idx == first
        # work at the selected position IS the original value (pre-knockout)
        out = jnp.where(sel, jnp.maximum(work, 0.0), out)  # postact_fn = ReLU
        work = jnp.where(sel, neg_inf, work)               # knock it out
        return work, out

    carry = (work, jnp.zeros((tm, d), jnp.float32))
    if k <= 32:
        for _ in range(k):                                  # LLO sees full chain
            carry = select_one(carry)
    else:
        carry = lax.fori_loop(0, k, lambda _, c: select_one(c), carry, unroll=4)
    _, out = carry
    o_ref[...] = out.astype(o_ref.dtype)


def _topk_kernel_key16(x_ref, o_ref, *, k: int):
    """16-bit float path: single int32 max-reduce per round on a packed key."""
    x = x_ref[...]                                          # (TM, D) bf16/f16
    tm, d = x.shape
    lane = lax.broadcasted_iota(jnp.int32, (tm, d), 1)

    # Reinterpret the 16 value bits and make them monotone-sortable as ints.
    bits = pltpu.bitcast(x, jnp.uint16).astype(jnp.int32)   # [0, 65535]
    sortable = jnp.where(bits < 0x8000, bits + 0x8000, 0xFFFF - bits)
    # Embed lowest-index tie-break; key stays a positive int32 (needs D<=32768).
    key = sortable * 32768 + (32767 - lane)

    relu_x = jnp.maximum(x, jnp.zeros_like(x))              # hoisted once
    out0 = jnp.zeros_like(x)

    def select_one(carry):
        key, out = carry
        m = jnp.max(key, axis=-1, keepdims=True)            # ONE XLU reduce
        sel = key == m
        out = jnp.where(sel, relu_x, out)
        key = jnp.where(sel, -1, key)                        # knockout
        return key, out

    carry = (key, out0)
    if k <= 32:
        for _ in range(k):
            carry = select_one(carry)
    else:
        carry = lax.fori_loop(0, k, lambda _, c: select_one(c), carry, unroll=4)
    _, out = carry
    o_ref[...] = out.astype(o_ref.dtype)


# --------------------------------------------------------------------------- #
# Wrapper
# --------------------------------------------------------------------------- #
_SUBLANE = {4: 8, 2: 16, 1: 32}   # native sublane multiple per itemsize


def _vmem_capacity_bytes() -> int:
    try:
        return int(pltpu.get_tpu_info().vmem_capacity_bytes)
    except Exception:
        return 64 << 20            # conservative default (v7x-sized)


def _choose_row_tile(rows: int, d: int, itemsize: int):
    """Generation-aware row tile + scoped-VMEM limit."""
    sub = _SUBLANE.get(itemsize, 8)
    if _vmem_capacity_bytes() >= (96 << 20):   # v5e / v6e: 128 MiB VMEM
        target_bytes = 2 << 20                 # ~2 MiB input tile
        vmem_limit = 80 << 20
        min_steps = 2
    else:                                      # v7x: 64 MiB per TensorCore
        target_bytes = 1 << 20
        vmem_limit = 32 << 20
        min_steps = 4                          # 2 pipelined steps per core
    rt = max(sub, (target_bytes // max(1, d * itemsize)) // sub * sub)
    if rows >= min_steps * sub:                # keep the pipeline / both cores busy
        rt = min(rt, max(sub, (rows // min_steps) // sub * sub))
    rt = min(rt, pl.cdiv(rows, sub) * sub)     # never much bigger than the data
    return rt, vmem_limit


def topk_pallas(x: jax.Array, k: int) -> jax.Array:
    """Applies TopK(k, postact=ReLU) along the last axis of x (forward only)."""
    orig_shape = x.shape
    d = orig_shape[-1]
    if not (0 < k <= d):
        raise ValueError(f"k={k} must satisfy 0 < k <= last dim ({d})")
    if not jnp.issubdtype(x.dtype, jnp.floating):
        raise NotImplementedError("topk_pallas supports floating dtypes only")

    rows = math.prod(orig_shape[:-1]) if orig_shape[:-1] else 1
    x2 = x.reshape(rows, d)

    itemsize = x.dtype.itemsize
    row_tile, vmem_limit = _choose_row_tile(rows, d, itemsize)

    use_key16 = (itemsize == 2) and (d <= 32768)
    kernel = functools.partial(
        _topk_kernel_key16 if use_key16 else _topk_kernel_f32, k=k)

    grid = (pl.cdiv(rows, row_tile),)          # row grid overhangs, no host pad
    cost = pl.CostEstimate(
        flops=int(6 * rows * d * k),
        transcendentals=0,
        bytes_accessed=int(2 * rows * d * itemsize),
    )

    out = pl.pallas_call(
        kernel,
        out_shape=jax.ShapeDtypeStruct((rows, d), x.dtype),
        grid=grid,
        # Last block dim equals the full array dim -> any D is legal; Mosaic
        # masks the partial lanes on load/store and in the reductions.
        in_specs=[pl.BlockSpec((row_tile, d), lambda i: (i, 0))],
        out_specs=pl.BlockSpec((row_tile, d), lambda i: (i, 0)),
        compiler_params=pltpu.CompilerParams(
            dimension_semantics=("parallel",),
            vmem_limit_bytes=vmem_limit,
        ),
        cost_estimate=cost,
    )(x2)
    return out.reshape(orig_shape)


# --------------------------------------------------------------------------- #
# Pure-JAX reference (mirrors the PyTorch forward: topk -> ReLU -> scatter)
# --------------------------------------------------------------------------- #
def topk_reference(x: jax.Array, k: int) -> jax.Array:
    vals, idx = jax.lax.top_k(x, k)                              # (..., k)
    vals = jnp.maximum(vals, 0)                                  # postact = ReLU
    one_hot = jax.nn.one_hot(idx, x.shape[-1], dtype=x.dtype)    # (..., k, D)
    return jnp.einsum("...kd,...k->...d", one_hot, vals)


if __name__ == "__main__":
    key = jax.random.PRNGKey(0)
    # Small shapes consistent with the module: TopK acts on the last (hidden) dim.
    batch, seq, hidden = 2, 8, 32
    k = 4
    x = jax.random.normal(key, (batch, seq, hidden), dtype=jnp.float32)

    out = jax.block_until_ready(topk_pallas(x, k))
    ref = topk_reference(x, k)
    assert out.shape == x.shape and out.dtype == x.dtype
    assert jnp.allclose(out, ref, atol=1e-6), "Pallas TopK mismatch vs reference"
    # at most k nonzeros per row (fewer only if a kept value was ReLU'd to 0)
    assert int(jnp.max(jnp.sum(out != 0, axis=-1))) <= k

    # Ragged row count (15 rows) and non-128 hidden (40): f32 two-reduce path,
    # overhanging row block, no host-side padding.
    x2 = jax.random.normal(jax.random.PRNGKey(1), (3, 5, 40), dtype=jnp.float32)
    out2 = jax.block_until_ready(topk_pallas(x2, 7))
    assert jnp.allclose(out2, topk_reference(x2, 7), atol=1e-6), "ragged mismatch"

    # bf16 packed-key path (single XLU reduce per round).
    x3 = jax.random.normal(jax.random.PRNGKey(2), (2, 8, 40), dtype=jnp.bfloat16)
    out3 = jax.block_until_ready(topk_pallas(x3, 5))
    ref3 = topk_reference(x3, 5)
    assert out3.dtype == x3.dtype
    assert jnp.allclose(out3, ref3), "bf16 packed-key mismatch vs reference"

    print("KERNEL_OK")
</pallas_src>

<mosaic_0001>
module attributes {stable_mosaic.version = 11 : i64} {
  func.func @_topk_kernel_f32(%arg0: i32, %arg1: memref<16x32xf32, #tpu.memory_space<vmem>>, %arg2: memref<16x32xf32, #tpu.memory_space<vmem>>) attributes {dimension_semantics = [#tpu.dimension_semantics<parallel>], iteration_bounds = array<i64: 1>, scalar_prefetch = 0 : i64, scratch_operands = 0 : i64, tpu.core_type = #tpu.core_type<tc>, window_params = [{transform_indices = @transform_0, window_bounds = array<i64: 16, 32>}, {transform_indices = @transform_1, window_bounds = array<i64: 16, 32>}]} {
    %c0 = arith.constant 0 : index
    %c0_0 = arith.constant 0 : index
    %0 = vector.load %arg1[%c0, %c0_0] : memref<16x32xf32, #tpu.memory_space<vmem>>, vector<16x32xf32>
    %1 = tpu.iota {dimensions = array<i32: 1>} : vector<16x32xi32>
    %cst = arith.constant 0.000000e+00 : f32
    %2 = vector.broadcast %cst : f32 to vector<16x32xf32>
    %cst_1 = arith.constant dense<0xFF800000> : vector<16xf32>
    %3 = vector.multi_reduction <maximumf>, %0, %cst_1 [1] : vector<16x32xf32> to vector<16xf32>
    %4 = vector.shape_cast %3 : vector<16xf32> to vector<16x1xf32>
    %5 = vector.broadcast %4 : vector<16x1xf32> to vector<16x32xf32>
    %6 = arith.cmpf oeq, %0, %5 : vector<16x32xf32>
    %c32_i32 = arith.constant 32 : i32
    %7 = vector.broadcast %c32_i32 : i32 to vector<16x32xi32>
    %8 = arith.select %6, %1, %7 : vector<16x32xi1>, vector<16x32xi32>
    %cst_2 = arith.constant dense<2147483647> : vector<16xi32>
    %9 = vector.multi_reduction <minsi>, %8, %cst_2 [1] : vector<16x32xi32> to vector<16xi32>
    %10 = vector.shape_cast %9 : vector<16xi32> to vector<16x1xi32>
    %11 = vector.broadcast %10 : vector<16x1xi32> to vector<16x32xi32>
    %12 = arith.cmpi eq, %1, %11 : vector<16x32xi32>
    %cst_3 = arith.constant 0.000000e+00 : f32
    %13 = vector.broadcast %cst_3 : f32 to vector<16x32xf32>
    %14 = arith.maximumf %0, %13 : vector<16x32xf32>
    %15 = arith.select %12, %14, %2 : vector<16x32xi1>, vector<16x32xf32>
    %cst_4 = arith.constant 0xFF800000 : f32
    %16 = vector.broadcast %cst_4 : f32 to vector<16x32xf32>
    %17 = arith.select %12, %16, %0 : vector<16x32xi1>, vector<16x32xf32>
    %cst_5 = arith.constant dense<0xFF800000> : vector<16xf32>
    %18 = vector.multi_reduction <maximumf>, %17, %cst_5 [1] : vector<16x32xf32> to vector<16xf32>
    %19 = vector.shape_cast %18 : vector<16xf32> to vector<16x1xf32>
    %20 = vector.broadcast %19 : vector<16x1xf32> to vector<16x32xf32>
    %21 = arith.cmpf oeq, %17, %20 : vector<16x32xf32>
    %c32_i32_6 = arith.constant 32 : i32
    %22 = vector.broadcast %c32_i32_6 : i32 to vector<16x32xi32>
    %23 = arith.select %21, %1, %22 : vector<16x32xi1>, vector<16x32xi32>
    %cst_7 = arith.constant dense<2147483647> : vector<16xi32>
    %24 = vector.multi_reduction <minsi>, %23, %cst_7 [1] : vector<16x32xi32> to vector<16xi32>
    %25 = vector.shape_cast %24 : vector<16xi32> to vector<16x1xi32>
    %26 = vector.broadcast %25 : vector<16x1xi32> to vector<16x32xi32>
    %27 = arith.cmpi eq, %1, %26 : vector<16x32xi32>
    %cst_8 = arith.constant 0.000000e+00 : f32
    %28 = vector.broadcast %cst_8 : f32 to vector<16x32xf32>
    %29 = arith.maximumf %17, %28 : vector<16x32xf32>
    %30 = arith.select %27, %29, %15 : vector<16x32xi1>, vector<16x32xf32>
    %cst_9 = arith.constant 0xFF800000 : f32
    %31 = vector.broadcast %cst_9 : f32 to vector<16x32xf32>
    %32 = arith.select %27, %31, %17 : vector<16x32xi1>, vector<16x32xf32>
    %cst_10 = arith.constant dense<0xFF800000> : vector<16xf32>
    %33 = vector.multi_reduction <maximumf>, %32, %cst_10 [1] : vector<16x32xf32> to vector<16xf32>
    %34 = vector.shape_cast %33 : vector<16xf32> to vector<16x1xf32>
    %35 = vector.broadcast %34 : vector<16x1xf32> to vector<16x32xf32>
    %36 = arith.cmpf oeq, %32, %35 : vector<16x32xf32>
    %c32_i32_11 = arith.constant 32 : i32
    %37 = vector.broadcast %c32_i32_11 : i32 to vector<16x32xi32>
    %38 = arith.select %36, %1, %37 : vector<16x32xi1>, vector<16x32xi32>
    %cst_12 = arith.constant dense<2147483647> : vector<16xi32>
    %39 = vector.multi_reduction <minsi>, %38, %cst_12 [1] : vector<16x32xi32> to vector<16xi32>
    %40 = vector.shape_cast %39 : vector<16xi32> to vector<16x1xi32>
    %41 = vector.broadcast %40 : vector<16x1xi32> to vector<16x32xi32>
    %42 = arith.cmpi eq, %1, %41 : vector<16x32xi32>
    %cst_13 = arith.constant 0.000000e+00 : f32
    %43 = vector.broadcast %cst_13 : f32 to vector<16x32xf32>
    %44 = arith.maximumf %32, %43 : vector<16x32xf32>
    %45 = arith.select %42, %44, %30 : vector<16x32xi1>, vector<16x32xf32>
    %cst_14 = arith.constant 0xFF800000 : f32
    %46 = vector.broadcast %cst_14 : f32 to vector<16x32xf32>
    %47 = arith.select %42, %46, %32 : vector<16x32xi1>, vector<16x32xf32>
    %cst_15 = arith.constant dense<0xFF800000> : vector<16xf32>
    %48 = vector.multi_reduction <maximumf>, %47, %cst_15 [1] : vector<16x32xf32> to vector<16xf32>
    %49 = vector.shape_cast %48 : vector<16xf32> to vector<16x1xf32>
    %50 = vector.broadcast %49 : vector<16x1xf32> to vector<16x32xf32>
    %51 = arith.cmpf oeq, %47, %50 : vector<16x32xf32>
    %c32_i32_16 = arith.constant 32 : i32
    %52 = vector.broadcast %c32_i32_16 : i32 to vector<16x32xi32>
    %53 = arith.select %51, %1, %52 : vector<16x32xi1>, vector<16x32xi32>
    %cst_17 = arith.constant dense<2147483647> : vector<16xi32>
    %54 = vector.multi_reduction <minsi>, %53, %cst_17 [1] : vector<16x32xi32> to vector<16xi32>
    %55 = vector.shape_cast %54 : vector<16xi32> to vector<16x1xi32>
    %56 = vector.broadcast %55 : vector<16x1xi32> to vector<16x32xi32>
    %57 = arith.cmpi eq, %1, %56 : vector<16x32xi32>
    %cst_18 = arith.constant 0.000000e+00 : f32
    %58 = vector.broadcast %cst_18 : f32 to vector<16x32xf32>
    %59 = arith.maximumf %47, %58 : vector<16x32xf32>
    %60 = arith.select %57, %59, %45 : vector<16x32xi1>, vector<16x32xf32>
    %c0_19 = arith.constant 0 : index
    %c0_20 = arith.constant 0 : index
    %61 = vector.load %arg2[%c0_19, %c0_20] : memref<16x32xf32, #tpu.memory_space<vmem>>, vector<16x32xf32>
    tpu.vector_store %arg2[%c0_19, %c0_20], %60 {strides = array<i32>} : memref<16x32xf32, #tpu.memory_space<vmem>>, vector<16x32xf32>,
    return
  }
  func.func @transform_0(%arg0: i32) -> (i32, i32) {
    %c0_i32 = arith.constant 0 : i32
    %c0_i32_0 = arith.constant 0 : i32
    return %arg0, %c0_i32 : i32, i32
  }
  func.func @transform_1(%arg0: i32) -> (i32, i32) {
    %c0_i32 = arith.constant 0 : i32
    %c0_i32_0 = arith.constant 0 : i32
    return %arg0, %c0_i32 : i32, i32
  }
}

</mosaic_0001>

<llo_original>
// kernel: tpu_custom_call.1
$region0: #{tpu_custom_call.1}
  #allocation0 [shape = 'u32[]', space=smem, size = 0x4, offset = 0x4, fixed_abs, tag = 'smem constant byte address 0x4 - core index']
  #allocation1 [shape = 'u32[144,128]{1,0:T(1,128)}', space=vmem, size = 0x12000, scoped, tag = 'internal scratch']
  %s0 = inlined_call_operand.hbm [shape: f32[16,32], index: 0, kind: input, shape index: {}]
  %s1 = inlined_call_operand.hbm [shape: f32[16,32], index: 1, kind: output, shape index: {}]
  %s2 = sld [smem:[#allocation0]]
  $region18: #{tpu_custom_call.1} parent=0
    _
  %s4 = ssub.s32 1, %s2
  %s5 = scalar_select 0, %s4, %s2
  $region1: #{tpu_custom_call.1} parent=0
    #allocation2 [shape = 'u8[8192]{0}', space=vmem, size = 0x2000, scoped, tag = 'input window, operand 0, single buffered']
    #allocation3 [shape = 's32[1]{0}', space=sflag, size = 0x4, scoped, tag = 'scoped memory for tpu_custom_call.1']
    #allocation4 [shape = 's32[1]{0}', space=sflag, size = 0x4, scoped, tag = 'scoped memory for tpu_custom_call.1']
    #allocation5 [shape = 'u8[8192]{0}', space=vmem, size = 0x2000, scoped, tag = 'output window, operand 0, single buffered']
    %6 = vsyncpa [#allocation3], 0
    %7 = vsyncpa [#allocation4], 0
    // Predicated region
    $region2: #{tpu_custom_call.1} parent=1 // pred_check
      _
    $region3: #{tpu_custom_call.1} parent=1 // pred_check_branch
      %9 = sbr.rel (0) target = $region5
    $region4: #{tpu_custom_call.1} parent=1 // pred_region
      %s11 = ssub.s32 256, 256
      %12 = vsyncadd [#allocation3], %s11
      %s13 = sshll.u32 [#allocation2], 4
      %s14 = int_to_ptr.vmem [resolvable:$true] %s13
      %19 = dma.hbm_to_vmem [thread:$0]  %s0, 256, %s14, [#allocation3], 128, 128, 8
    $region5: #{tpu_custom_call.1} parent=1 // pred_fallthru
      _
    // Predicated region
    $region6: #{tpu_custom_call.1} parent=1 // pred_check
      _
    $region7: #{tpu_custom_call.1} parent=1 // pred_check_branch
      %21 = sbr.rel (0) target = $region9
    $region8: #{tpu_custom_call.1} parent=1 // pred_region
      %22 = dma.done [#allocation3], 256
    $region9: #{tpu_custom_call.1} parent=1 // pred_fallthru
      _
    %v23 = vld [vmem:[#allocation2] sm:$0xff]
    %v24 = vld [vmem:[#allocation2 + $0x8] sm:$0xff]
    %v25 = vlaneseq
    %v26 = vand.u32 %v25, 127
    %vm27 = vcmask 261120
    %v28 = vsel %vm27, %v23, -inf
    %29 = vmax.xlane.f32.xlu0 %v28
    %v30 = vpop.xlane.xlu0 %29
    %v31 = vsel %vm27, %v24, -inf
    %32 = vmax.xlane.f32.xlu0 %v31
    %v33 = vpop.xlane.xlu0 %32
    %vm34 = vcmp.eq.f32.partialorder %v23, %v30
    %vm35 = vcmp.eq.f32.partialorder %v24, %v33
    %v36 = vsel %vm34, %v26, 32
    %v37 = vsel %vm35, %v26, 32
    %v38 = vsel %vm27, %v36, 2147483647
    %v39 = vand.u32 %v38, 65535
    %v40 = vshra.s32 %v38, 16
    %v41 = vcvt.s32.f32 %v39
    %v42 = vcvt.s32.f32 %v40
    %43 = vmin.xlane.f32.xlu0 %v42
    %v44 = vpop.xlane.xlu0 %43
    %vm45 = vcmp.eq.f32.partialorder %v42, %v44
    %v46 = vsel %vm45, %v41, inf
    %47 = vmin.xlane.f32.xlu0 %v46
    %v48 = vpop.xlane.xlu0 %47
    %v49 = vcvt.f32.s32 %v48
    %v50 = vcvt.f32.s32 %v44
    %v51 = vshll.u32 %v50, 16
    %v52 = vadd.s32 %v51, %v49
    %v53 = vsel %vm27, %v37, 2147483647
    %v54 = vand.u32 %v53, 65535
    %v55 = vshra.s32 %v53, 16
    %v56 = vcvt.s32.f32 %v54
    %v57 = vcvt.s32.f32 %v55
    %58 = vmin.xlane.f32.xlu0 %v57
    %v59 = vpop.xlane.xlu0 %58
    %vm60 = vcmp.eq.f32.partialorder %v57, %v59
    %v61 = vsel %vm60, %v56, inf
    %62 = vmin.xlane.f32.xlu0 %v61
    %v63 = vpop.xlane.xlu0 %62
    %v64 = vcvt.f32.s32 %v63
    %v65 = vcvt.f32.s32 %v59
    %v66 = vshll.u32 %v65, 16
    %v67 = vadd.s32 %v66, %v64
    %vm68 = vcmp.eq.s32.totalorder %v26, %v52
    %vm69 = vcmp.eq.s32.totalorder %v26, %v67
    %v70 = vmax.f32 %v23, 0.0
    %v71 = vmax.f32 %v24, 0.0
    %v72 = vsel %vm68, %v70, 0.0
    %v73 = vsel %vm69, %v71, 0.0
    %v74 = vsel %vm68, -inf, %v23
    %v75 = vsel %vm69, -inf, %v24
    %v76 = vsel %vm27, %v74, -inf
    %77 = vmax.xlane.f32.xlu0 %v76
    %v78 = vpop.xlane.xlu0 %77
    %v79 = vsel %vm27, %v75, -inf
    %80 = vmax.xlane.f32.xlu0 %v79
    %v81 = vpop.xlane.xlu0 %80
    %vm82 = vcmp.eq.f32.partialorder %v74, %v78
    %vm83 = vcmp.eq.f32.partialorder %v75, %v81
    %v84 = vsel %vm82, %v26, 32
    %v85 = vsel %vm83, %v26, 32
    %v86 = vsel %vm27, %v84, 2147483647
    %v87 = vand.u32 %v86, 65535
    %v88 = vshra.s32 %v86, 16
    %v89 = vcvt.s32.f32 %v87
    %v90 = vcvt.s32.f32 %v88
    %91 = vmin.xlane.f32.xlu0 %v90
    %v92 = vpop.xlane.xlu0 %91
    %vm93 = vcmp.eq.f32.partialorder %v90, %v92
    %v94 = vsel %vm93, %v89, inf
    %95 = vmin.xlane.f32.xlu0 %v94
    %v96 = vpop.xlane.xlu0 %95
    %v97 = vcvt.f32.s32 %v96
    %v98 = vcvt.f32.s32 %v92
    %v99 = vshll.u32 %v98, 16
    %v100 = vadd.s32 %v99, %v97
    %v101 = vsel %vm27, %v85, 2147483647
    %v102 = vand.u32 %v101, 65535
    %v103 = vshra.s32 %v101, 16
    %v104 = vcvt.s32.f32 %v102
    %v105 = vcvt.s32.f32 %v103
    %106 = vmin.xlane.f32.xlu0 %v105
    %v107 = vpop.xlane.xlu0 %106
    %vm108 = vcmp.eq.f32.partialorder %v105, %v107
    %v109 = vsel %vm108, %v104, inf
    %110 = vmin.xlane.f32.xlu0 %v109
    %v111 = vpop.xlane.xlu0 %110
    %v112 = vcvt.f32.s32 %v111
    %v113 = vcvt.f32.s32 %v107
    %v114 = vshll.u32 %v113, 16
    %v115 = vadd.s32 %v114, %v112
    %vm116 = vcmp.eq.s32.totalorder %v26, %v100
    %vm117 = vcmp.eq.s32.totalorder %v26, %v115
    %v118 = vmax.f32 %v74, 0.0
    %v119 = vmax.f32 %v75, 0.0
    %v120 = vsel %vm116, %v118, %v72
    %v121 = vsel %vm117, %v119, %v73
    %v122 = vsel %vm116, -inf, %v74
    %v123 = vsel %vm117, -inf, %v75
    %v124 = vsel %vm27, %v122, -inf
    %125 = vmax.xlane.f32.xlu0 %v124
    %v126 = vpop.xlane.xlu0 %125
    %v127 = vsel %vm27, %v123, -inf
    %128 = vmax.xlane.f32.xlu0 %v127
    %v129 = vpop.xlane.xlu0 %128
    %vm130 = vcmp.eq.f32.partialorder %v122, %v126
    %vm131 = vcmp.eq.f32.partialorder %v123, %v129
    %v132 = vsel %vm130, %v26, 32
    %v133 = vsel %vm131, %v26, 32
    %v134 = vsel %vm27, %v132, 2147483647
    %v135 = vand.u32 %v134, 65535
    %v136 = vshra.s32 %v134, 16
    %v137 = vcvt.s32.f32 %v135
    %v138 = vcvt.s32.f32 %v136
    %139 = vmin.xlane.f32.xlu0 %v138
    %v140 = vpop.xlane.xlu0 %139
    %vm141 = vcmp.eq.f32.partialorder %v138, %v140
    %v142 = vsel %vm141, %v137, inf
    %143 = vmin.xlane.f32.xlu0 %v142
    %v144 = vpop.xlane.xlu0 %143
    %v145 = vcvt.f32.s32 %v144
    %v146 = vcvt.f32.s32 %v140
    %v147 = vshll.u32 %v146, 16
    %v148 = vadd.s32 %v147, %v145
    %v149 = vsel %vm27, %v133, 2147483647
    %v150 = vand.u32 %v149, 65535
    %v151 = vshra.s32 %v149, 16
    %v152 = vcvt.s32.f32 %v150
    %v153 = vcvt.s32.f32 %v151
    %154 = vmin.xlane.f32.xlu0 %v153
    %v155 = vpop.xlane.xlu0 %154
    %vm156 = vcmp.eq.f32.partialorder %v153, %v155
    %v157 = vsel %vm156, %v152, inf
    %158 = vmin.xlane.f32.xlu0 %v157
    %v159 = vpop.xlane.xlu0 %158
    %v160 = vcvt.f32.s32 %v159
    %v161 = vcvt.f32.s32 %v155
    %v162 = vshll.u32 %v161, 16
    %v163 = vadd.s32 %v162, %v160
    %vm164 = vcmp.eq.s32.totalorder %v26, %v148
    %vm165 = vcmp.eq.s32.totalorder %v26, %v163
    %v166 = vmax.f32 %v122, 0.0
    %v167 = vmax.f32 %v123, 0.0
    %v168 = vsel %vm164, %v166, %v120
    %v169 = vsel %vm165, %v167, %v121
    %v170 = vsel %vm164, -inf, %v122
    %v171 = vsel %vm165, -inf, %v123
    %v172 = vsel %vm27, %v170, -inf
    %173 = vmax.xlane.f32.xlu0 %v172
    %v174 = vpop.xlane.xlu0 %173
    %v175 = vsel %vm27, %v171, -inf
    %176 = vmax.xlane.f32.xlu0 %v175
    %v177 = vpop.xlane.xlu0 %176
    %vm178 = vcmp.eq.f32.partialorder %v170, %v174
    %vm179 = vcmp.eq.f32.partialorder %v171, %v177
    %v180 = vsel %vm178, %v26, 32
    %v181 = vsel %vm179, %v26, 32
    %v182 = vsel %vm27, %v180, 2147483647
    %v183 = vand.u32 %v182, 65535
    %v184 = vshra.s32 %v182, 16
    %v185 = vcvt.s32.f32 %v183
    %v186 = vcvt.s32.f32 %v184
    %187 = vmin.xlane.f32.xlu0 %v186
    %v188 = vpop.xlane.xlu0 %187
    %vm189 = vcmp.eq.f32.partialorder %v186, %v188
    %v190 = vsel %vm189, %v185, inf
    %191 = vmin.xlane.f32.xlu0 %v190
    %v192 = vpop.xlane.xlu0 %191
    %v193 = vcvt.f32.s32 %v192
    %v194 = vcvt.f32.s32 %v188
    %v195 = vshll.u32 %v194, 16
    %v196 = vadd.s32 %v195, %v193
    %v197 = vsel %vm27, %v181, 2147483647
    %v198 = vand.u32 %v197, 65535
    %v199 = vshra.s32 %v197, 16
    %v200 = vcvt.s32.f32 %v198
    %v201 = vcvt.s32.f32 %v199
    %202 = vmin.xlane.f32.xlu0 %v201
    %v203 = vpop.xlane.xlu0 %202
    %vm204 = vcmp.eq.f32.partialorder %v201, %v203
    %v205 = vsel %vm204, %v200, inf
    %206 = vmin.xlane.f32.xlu0 %v205
    %v207 = vpop.xlane.xlu0 %206
    %v208 = vcvt.f32.s32 %v207
    %v209 = vcvt.f32.s32 %v203
    %v210 = vshll.u32 %v209, 16
    %v211 = vadd.s32 %v210, %v208
    %vm212 = vcmp.eq.s32.totalorder %v26, %v196
    %vm213 = vcmp.eq.s32.totalorder %v26, %v211
    %v214 = vmax.f32 %v170, 0.0
    %v215 = vmax.f32 %v171, 0.0
    %v216 = vsel %vm212, %v214, %v168
    %v217 = vsel %vm213, %v215, %v169
    %218 = vst.msk [vmem:[#allocation5] sm:$0xff] %vm27, %v216
    %219 = vst.msk [vmem:[#allocation5 + $0x8] sm:$0xff] %vm27, %v217
    // Predicated region
    $region10: #{tpu_custom_call.1} parent=1 // pred_check
      _
    $region11: #{tpu_custom_call.1} parent=1 // pred_check_branch
      %221 = sbr.rel (0) target = $region13
    $region12: #{tpu_custom_call.1} parent=1 // pred_region
      %s223 = ssub.s32 256, 256
      %224 = vsyncadd [#allocation4], %s223
      %s225 = sshll.u32 [#allocation5], 4
      %s226 = int_to_ptr.vmem [resolvable:$true] %s225
      %231 = dma.vmem_to_hbm [thread:$0]  %s226, 256, %s1, [#allocation4], 128, 128, 8
    $region13: #{tpu_custom_call.1} parent=1 // pred_fallthru
      _
    // Predicated region
    $region14: #{tpu_custom_call.1} parent=1 // pred_check
      _
    $region15: #{tpu_custom_call.1} parent=1 // pred_check_branch
      %233 = sbr.rel (0) target = $region17
    $region16: #{tpu_custom_call.1} parent=1 // pred_region
      %234 = dma.done [#allocation4], 256
    $region17: #{tpu_custom_call.1} parent=1 // pred_fallthru
      _
    %235 = vsyncpa [#allocation3], 1
    %236 = vsyncpa [#allocation4], 1

</llo_original>
